<compile_context>
chip_gen: v6e
topology: v6e:2x2x1
jax: 0.10.0
libtpu: 0.0.40
codegen_flags: <defaults>
</compile_context>

<pallas_src>
import math

import jax
import jax.numpy as jnp
from jax.experimental import pallas as pl
from jax.experimental.pallas import tpu as pltpu


def fixed_embedding_kernel(idx_ref, w_ref, o_ref):
    # idx_ref: (TN, 1) int32   w_ref: (c_in, d_pad)   o_ref: (TN, d_pad)
    idx = idx_ref[...]                                          # (TN, 1)
    tn = idx.shape[0]
    c_in = w_ref.shape[0]
    lane_ids = jax.lax.broadcasted_iota(jnp.int32, (tn, c_in), 1)
    one_hot = (lane_ids == idx).astype(w_ref.dtype)             # (TN, c_in)
    # Single matmul -> store. HIGHEST precision keeps f32 rows exact copies.
    o_ref[...] = jnp.dot(
        one_hot, w_ref[...],
        preferred_element_type=jnp.float32,
        precision=jax.lax.Precision.HIGHEST,
    ).astype(o_ref.dtype)


def _round_up(a, b):
    return ((a + b - 1) // b) * b


def fixed_embedding(x_idx, table, *, tile_rows=1024, out_dtype=None):
    """table[x_idx] with shape x_idx.shape + (d_model,).

    x_idx: integer indices, any shape. table: (c_in, d_model).
    out_dtype: defaults to table.dtype (f32, matching nn.Embedding); pass
    jnp.bfloat16 if the consumer accepts bf16 activations — output writeback is
    the dominant cost, so halving bytes written is ~2x on this kernel.
    """
    orig_shape = x_idx.shape
    c_in, d_model = table.shape
    out_dtype = table.dtype if out_dtype is None else jnp.dtype(out_dtype)

    flat = x_idx.reshape(-1).astype(jnp.int32)
    n = int(flat.shape[0])

    # Lane-dense output: pad d_model to a multiple of 128 only if needed.
    d_pad = _round_up(d_model, 128)
    table_p = table if d_pad == d_model else jnp.pad(
        table, ((0, 0), (0, d_pad - d_model)))

    # Row tiling: TN a multiple of 8 (or == n when n <= 8). No row padding —
    # Pallas masks the partial last block's output write.
    if n <= 8:
        tn = n
    else:
        tn = min(_round_up(tile_rows, 8), _round_up(n, 8))
        if pl.cdiv(n, tn) < 2:                 # keep >= 2 grid steps (v7x megacore)
            tn = max(8, _round_up(pl.cdiv(n, 2), 8))
    grid = (pl.cdiv(n, tn),)

    idx2d = flat.reshape(n, 1)

    # Resident table: constant index_map, single-buffered (no re-DMA anyway,
    # and the second buffer is pure VMEM waste — critical on v7x 64 MiB/TC).
    try:
        table_spec = pl.BlockSpec((c_in, d_pad), lambda i: (0, 0),
                                  pipeline_mode=pl.Buffered(1))
    except Exception:  # older jax without pipeline_mode on BlockSpec
        table_spec = pl.BlockSpec((c_in, d_pad), lambda i: (0, 0))

    table_bytes = c_in * d_pad * table_p.dtype.itemsize
    out_itemsize = jnp.dtype(out_dtype).itemsize
    cost = pl.CostEstimate(
        flops=2 * n * c_in * d_pad,
        transcendentals=0,
        bytes_accessed=n * 4 + table_bytes + n * d_pad * out_itemsize,
    )

    compiler_kwargs = dict(dimension_semantics=("parallel",))
    # 1x table (single-buffered) + 2x output blocks + 2x idx blocks + slack.
    vmem_est = table_bytes + 2 * tn * d_pad * out_itemsize + 2 * tn * 4 + (2 << 20)
    if vmem_est > (28 << 20):
        compiler_kwargs["vmem_limit_bytes"] = int(min(vmem_est, 100 << 20))

    out = pl.pallas_call(
        fixed_embedding_kernel,
        out_shape=jax.ShapeDtypeStruct((n, d_pad), out_dtype),
        grid_spec=pltpu.PrefetchScalarGridSpec(
            num_scalar_prefetch=0,
            grid=grid,
            in_specs=[
                pl.BlockSpec((tn, 1), lambda i: (i, 0)),
                table_spec,
            ],
            out_specs=pl.BlockSpec((tn, d_pad), lambda i: (i, 0)),
        ),
        compiler_params=pltpu.CompilerParams(**compiler_kwargs),
        cost_estimate=cost,
    )(idx2d, table_p)

    if d_pad != d_model:
        out = out[:, :d_model]
    return out.reshape(*orig_shape, d_model)


def build_fixed_table(c_in, d_model):
    """Mirror of the PyTorch sinusoidal table construction (d_model even)."""
    position = jnp.arange(c_in, dtype=jnp.float32)[:, None]          # (c_in, 1)
    div_term = jnp.exp(jnp.arange(0, d_model, 2, dtype=jnp.float32)
                       * -(math.log(10000.0) / d_model))             # (d_model/2,)
    w = jnp.zeros((c_in, d_model), dtype=jnp.float32)
    w = w.at[:, 0::2].set(jnp.sin(position * div_term))
    w = w.at[:, 1::2].set(jnp.cos(position * div_term))
    return w


def reference_fixed_embedding(x_idx, table):
    """Plain-JAX reference: embedding lookup (.detach() is a no-op in forward)."""
    return jnp.take(table, x_idx, axis=0)


if __name__ == "__main__":
    # Small shapes consistent with the module: c_in = vocab of the fixed
    # embedding, d_model = hidden size; x is an integer index tensor (B, L).
    B, L, c_in, d_model = 2, 8, 24, 32

    key = jax.random.PRNGKey(0)
    x = jax.random.randint(key, (B, L), 0, c_in, dtype=jnp.int32)

    table = build_fixed_table(c_in, d_model)

    out = fixed_embedding(x, table)
    out = jax.block_until_ready(out)

    ref = reference_fixed_embedding(x, table)
    assert out.shape == (B, L, d_model), out.shape
    assert jnp.allclose(out, ref, atol=1e-6, rtol=1e-6), "mismatch vs reference"

    print("KERNEL_OK")
</pallas_src>

<mosaic_0001>
module attributes {stable_mosaic.version = 11 : i64} {
  func.func @fixed_embedding_kernel(%arg0: i32, %arg1: memref<8x1xi32, #tpu.memory_space<vmem>>, %arg2: memref<24x128xf32, #tpu.memory_space<vmem>>, %arg3: memref<8x128xf32, #tpu.memory_space<vmem>>) attributes {dimension_semantics = [#tpu.dimension_semantics<parallel>], iteration_bounds = array<i64: 2>, scalar_prefetch = 0 : i64, scratch_operands = 0 : i64, tpu.core_type = #tpu.core_type<tc>, window_params = [{transform_indices = @transform_0, window_bounds = array<i64: 8, 1>}, {pipeline_mode = #tpu.pipeline_mode<synchronous>, transform_indices = @transform_1, window_bounds = array<i64: 24, 128>}, {transform_indices = @transform_2, window_bounds = array<i64: 8, 128>}]} {
    %c0 = arith.constant 0 : index
    %c0_0 = arith.constant 0 : index
    %0 = vector.load %arg1[%c0, %c0_0] : memref<8x1xi32, #tpu.memory_space<vmem>>, vector<8x1xi32>
    %1 = tpu.iota {dimensions = array<i32: 1>} : vector<8x24xi32>
    %2 = vector.broadcast %0 : vector<8x1xi32> to vector<8x24xi32>
    %3 = arith.cmpi eq, %1, %2 : vector<8x24xi32>
    %4 = arith.extui %3 : vector<8x24xi1> to vector<8x24xi32>
    %5 = arith.sitofp %4 : vector<8x24xi32> to vector<8x24xf32>
    %c0_1 = arith.constant 0 : index
    %c0_2 = arith.constant 0 : index
    %6 = vector.load %arg2[%c0_1, %c0_2] : memref<24x128xf32, #tpu.memory_space<vmem>>, vector<24x128xf32>
    %cst = arith.constant dense<0.000000e+00> : vector<8x128xf32>
    %7 = tpu.matmul %5, %6, %cst {dimension_numbers = #tpu.dot_dimension_numbers<[1], [0], [0], [1], [0, 0, 1, 1], [], []>, precision = #tpu.contract_precision<fp32>} : vector<8x24xf32>, vector<24x128xf32>, vector<8x128xf32> -> vector<8x128xf32>
    %c0_3 = arith.constant 0 : index
    %c0_4 = arith.constant 0 : index
    %8 = vector.load %arg3[%c0_3, %c0_4] : memref<8x128xf32, #tpu.memory_space<vmem>>, vector<8x128xf32>
    tpu.vector_store %arg3[%c0_3, %c0_4], %7 {strides = array<i32>} : memref<8x128xf32, #tpu.memory_space<vmem>>, vector<8x128xf32>,
    return
  }
  func.func @transform_0(%arg0: i32) -> (i32, i32) {
    %c0_i32 = arith.constant 0 : i32
    %c0_i32_0 = arith.constant 0 : i32
    return %arg0, %c0_i32 : i32, i32
  }
  func.func @transform_1(%arg0: i32) -> (i32, i32) {
    %c0_i32 = arith.constant 0 : i32
    %c0_i32_0 = arith.constant 0 : i32
    %c0_i32_1 = arith.constant 0 : i32
    return %c0_i32, %c0_i32_0 : i32, i32
  }
  func.func @transform_2(%arg0: i32) -> (i32, i32) {
    %c0_i32 = arith.constant 0 : i32
    %c0_i32_0 = arith.constant 0 : i32
    return %arg0, %c0_i32 : i32, i32
  }
}

</mosaic_0001>

<llo_original>
// kernel: tpu_custom_call.1
$region0: #{tpu_custom_call.1}
  #allocation0 [shape = 'u32[]', space=smem, size = 0x4, offset = 0x4, fixed_abs, tag = 'smem constant byte address 0x4 - core index']
  #allocation1 [shape = 'u32[144,128]{1,0:T(1,128)}', space=vmem, size = 0x12000, scoped, tag = 'internal scratch']
  %s0 = inlined_call_operand.vmem [shape: s32[16,1], index: 0, kind: input, shape index: {}]
  %s1 = inlined_call_operand.hbm [shape: f32[24,128], index: 1, kind: input, shape index: {}]
  %s2 = inlined_call_operand.hbm [shape: f32[16,128], index: 2, kind: output, shape index: {}]
  %s3 = sld [smem:[#allocation0]]
  $region45: #{tpu_custom_call.1} parent=0
    _
  %s5 = ssub.s32 1, %s3
  %s6 = scalar_select 0, %s5, %s3
  $region1: #{tpu_custom_call.1} parent=0
    #allocation2 [shape = 'u8[12288]{0}', space=vmem, size = 0x3000, scoped, tag = 'input window, operand 1, single buffered']
    #allocation3 [shape = 's32[2]{0}', space=sflag, size = 0x8, scoped, tag = 'scoped memory for tpu_custom_call.1']
    #allocation4 [shape = 's32[2]{0}', space=sflag, size = 0x8, scoped, tag = 'scoped memory for tpu_custom_call.1']
    #allocation5 [shape = 'u8[8192]{0}', space=vmem, size = 0x2000, scoped, tag = 'output window, operand 0']
    %7 = vsyncpa [#allocation3], 0
    %8 = vsyncpa [#allocation4], 0
    %s9 = scalar_lea.sflag [#allocation4], 1
    %10 = vsyncpa %s9, 0
    loop: start=0, step=1, limit=4
    $region2: #{tpu_custom_call.1} parent=1 // loop_pre_header
      _
    $region3: #{tpu_custom_call.1} parent=1 // loop_header
      %s12 = sphi 0, %s16
      %p13 = scmp.ge.s32.totalorder %s12, 4
      %s22 = sphi 0, %s24
      %s25 = sphi 0, %s22
      %s26 = sphi 0, %s25
      %s42 = sphi 0, %s26
      %s46 = sphi 0, %s46
      %s48 = sphi 0, %s46
      %s49 = sphi 0, %s48
      %s63 = sphi 0, %s49
      %s69 = sphi 0, %s71
      %s72 = sphi 0, %s69
      %s73 = sphi 0, %s72
      %s89 = sphi 0, %s73
    $region4: #{tpu_custom_call.1} parent=1 // loop_header_branch
      %15 = sbr.rel (%p13) target = $region8
    $region5: #{tpu_custom_call.1} parent=1 // loop_body
      %s17 = ssub.s32 %s12, 1
      %s18 = ssub.s32 %s12, 2
      %s19 = sadd.s32 %s12, 1
      %s20 = ssub.s32 %s12, %s19
      %p21 = scmp.eq.s32.totalorder %s20, 0
      %s23 = sadd.s32 %s22, 1
      %s24 = scalar_select %p21, %s22, %s23
      %p27 = pneg %p21
      %p28 = scmp.eq.s32.totalorder %s12, 1
      %p29 = por %p27, %p28
      %p30 = scmp.ne.s32.totalorder %s22, %s25
      %p31 = scmp.eq.s32.totalorder %s12, 0
      %p32 = por %p30, %p31
      %p33 = scmp.ne.s32.totalorder %s22, %s25
      %p34 = scmp.eq.s32.totalorder %s17, 1
      %p35 = por %p33, %p34
      %p36 = scmp.ne.s32.totalorder %s25, %s26
      %p37 = scmp.eq.s32.totalorder %s17, 0
      %p38 = por %p36, %p37
      %p39 = scmp.ne.s32.totalorder %s25, %s26
      %p40 = scmp.eq.s32.totalorder %s18, 1
      %p41 = por %p39, %p40
      %p43 = scmp.ne.s32.totalorder %s26, %s42
      %p44 = scmp.eq.s32.totalorder %s18, 0
      %p45 = por %p43, %p44
      %s47 = sadd.s32 %s46, 1
      %p50 = scmp.eq.s32.totalorder %s12, 1
      %p51 = scmp.ne.s32.totalorder %s46, %s48
      %p52 = scmp.eq.s32.totalorder %s12, 0
      %p53 = por %p51, %p52
      %p54 = scmp.ne.s32.totalorder %s46, %s48
      %p55 = scmp.eq.s32.totalorder %s17, 1
      %p56 = por %p54, %p55
      %p57 = scmp.ne.s32.totalorder %s48, %s49
      %p58 = scmp.eq.s32.totalorder %s17, 0
      %p59 = por %p57, %p58
      %p60 = scmp.ne.s32.totalorder %s48, %s49
      %p61 = scmp.eq.s32.totalorder %s18, 1
      %p62 = por %p60, %p61
      %p64 = scmp.ne.s32.totalorder %s49, %s63
      %p65 = scmp.eq.s32.totalorder %s18, 0
      %p66 = por %p64, %p65
      %s67 = ssub.s32 %s12, %s19
      %p68 = scmp.eq.s32.totalorder %s67, 0
      %s70 = sadd.s32 %s69, 1
      %s71 = scalar_select %p68, %s69, %s70
      %p74 = pneg %p68
      %p75 = scmp.eq.s32.totalorder %s12, 1
      %p76 = por %p74, %p75
      %p77 = scmp.ne.s32.totalorder %s69, %s72
      %p78 = scmp.eq.s32.totalorder %s12, 0
      %p79 = por %p77, %p78
      %p80 = scmp.ne.s32.totalorder %s69, %s72
      %p81 = scmp.eq.s32.totalorder %s17, 1
      %p82 = por %p80, %p81
      %p83 = scmp.ne.s32.totalorder %s72, %s73
      %p84 = scmp.eq.s32.totalorder %s17, 0
      %p85 = por %p83, %p84
      %p86 = scmp.ne.s32.totalorder %s72, %s73
      %p87 = scmp.eq.s32.totalorder %s18, 1
      %p88 = por %p86, %p87
      %p90 = scmp.ne.s32.totalorder %s73, %s89
      %p91 = scmp.eq.s32.totalorder %s18, 0
      %p92 = por %p90, %p91
      %p93 = scmp.le.s32.totalorder 1, %s12
      %p94 = scmp.lt.s32.totalorder %s12, 3
      %p95 = pnand %p93, %p94
      %p96 = pneg %p95
      // Predicated region
      $region9: #{tpu_custom_call.1} parent=5 // pred_check
        _
      $region10: #{tpu_custom_call.1} parent=5 // pred_check_branch
        %98 = sbr.rel (%p95) target = $region12
      $region11: #{tpu_custom_call.1} parent=5 // pred_region
        %s99 = ssub.s32 %s12, 1
        // Predicated region
        $region13: #{tpu_custom_call.1} parent=11 // pred_check
          %p100 = pneg %p59
        $region14: #{tpu_custom_call.1} parent=11 // pred_check_branch
          %102 = sbr.rel (%p100) target = $region16
        $region15: #{tpu_custom_call.1} parent=11 // pred_region
          %s104 = ssub.s32 384, 384
          %105 = vsyncadd [#allocation3], %s104
          %s106 = sshll.u32 [#allocation2], 4
          %s107 = int_to_ptr.vmem [resolvable:$true] %s106
          %112 = dma.hbm_to_vmem [thread:$0]  %s1, 384, %s107, [#allocation3], 128, 128, 8
        $region16: #{tpu_custom_call.1} parent=11 // pred_fallthru
          _
      $region12: #{tpu_custom_call.1} parent=5 // pred_fallthru
        _
      %p113 = scmp.lt.s32.totalorder %s12, 2
      // Predicated region
      $region17: #{tpu_custom_call.1} parent=5 // pred_check
        %p114 = pneg %p113
      $region18: #{tpu_custom_call.1} parent=5 // pred_check_branch
        %116 = sbr.rel (%p114) target = $region20
      $region19: #{tpu_custom_call.1} parent=5 // pred_region
        // Predicated region
        $region21: #{tpu_custom_call.1} parent=19 // pred_check
          %p117 = pneg %p32
        $region22: #{tpu_custom_call.1} parent=19 // pred_check_branch
          %119 = sbr.rel (%p117) target = $region24
        $region23: #{tpu_custom_call.1} parent=19 // pred_region
          %p120 = scmp.lt.s32.totalorder %s12, 1
          %s121 = scalar_select %p120, %s12, 1
          %s122 = smul.addr %s121, 8
          %s123 = scalar_lea.vmem %s0, %s122
        $region24: #{tpu_custom_call.1} parent=19 // pred_fallthru
          _
      $region20: #{tpu_custom_call.1} parent=5 // pred_fallthru
        _
      %p124 = scmp.le.s32.totalorder 1, %s12
      %p125 = scmp.lt.s32.totalorder %s12, 3
      %p126 = pnand %p124, %p125
      %p127 = pneg %p126
      // Predicated region
      $region25: #{tpu_custom_call.1} parent=5 // pred_check
        _
      $region26: #{tpu_custom_call.1} parent=5 // pred_check_branch
        %129 = sbr.rel (%p126) target = $region28
      $region27: #{tpu_custom_call.1} parent=5 // pred_region
        %s130 = ssub.s32 %s12, 1
        // Predicated region
        $region29: #{tpu_custom_call.1} parent=27 // pred_check
          %p131 = pneg %p59
        $region30: #{tpu_custom_call.1} parent=27 // pred_check_branch
          %133 = sbr.rel (%p131) target = $region32
        $region31: #{tpu_custom_call.1} parent=27 // pred_region
          %134 = dma.done [#allocation3], 384
        $region32: #{tpu_custom_call.1} parent=27 // pred_fallthru
          _
        %p135 = scmp.lt.s32.totalorder %s17, 1
        %s136 = scalar_select %p135, %s17, 1
        %s137 = smul.addr %s136, 8
        %s138 = scalar_lea.vmem %s0, %s137
        %p139 = pneg %p38
        %p140 = pneg %p35
        %p141 = pneg %p59
        %p142 = pneg %p56
        %p143 = pneg %p85
        %p144 = pneg %p82
        %s145 = sand.u32 %s72, 1
        %s146 = scalar_lea.sflag [#allocation4], %s145
        %s147 = sand.u32 %s72, 1
        %s148 = smul.addr %s147, 8
        %s149 = scalar_lea.vmem [#allocation5], %s148
        %p150 = scmp.lt.s32.totalorder %s17, 1
        %s151 = scalar_select %p150, %s17, 1
        %s152 = smul.addr %s151, 8
        %s153 = scalar_lea.vmem %s0, %s152
        %v154 = vld [vmem:[%s153] sm:$0xff]
        %v155 = vlaneseq
        %v156 = vand.u32 %v155, 127
        %157 = vset.pattern.permute.xlu0 0
        %158 = vperm.xlu0 %157, %v154
        %v159 = vpop.permute.xlu0 %158
        %vm160 = vcmp.eq.s32.totalorder %v156, %v159
        %v161 = vsel %vm160, 1, 0
        %v162 = vcvt.s32.f32 %v161
        %v163 = vld [vmem:[#allocation2] sm:$0xff]
        %v164 = vld [vmem:[#allocation2 + $0x8] sm:$0xff]
        %v165 = vld [vmem:[#allocation2 + $0x10] sm:$0xff]
        %vm166 = vcmask 195584
        %v168 = vsel %vm166, %v162, 0
        %170 = vmatprep.subr.mxu0 0.0
        %171 = vmatpush1.msra.mxu0 0.0
        %172 = vmatprep.subr.mxu0 0.0
        %173 = vmatpush1.msra.mxu0 0.0
        %174 = vmatprep.subr.mxu0 0.0
        %175 = vmatpush1.msra.mxu0 0.0
        %176 = vmatprep.subr.mxu0 0.0
        %177 = vmatpush1.msra.mxu0 0.0
        %178 = vmatprep.subr.mxu0 0.0
        %179 = vmatpush1.msra.mxu0 0.0
        %180 = vmatprep.subr.mxu0 0.0
        %181 = vmatpush1.msra.mxu0 0.0
        %182 = vmatprep.subr.mxu0 0.0
        %183 = vmatpush1.msra.mxu0 0.0
        %184 = vmatprep.subr.mxu0 0.0
        %185 = vmatpush1.msra.mxu0 0.0
        %186 = vmatprep.subr.mxu0 0.0
        %187 = vmatpush1.msra.mxu0 0.0
        %188 = vmatprep.subr.mxu0 0.0
        %189 = vmatpush1.msra.mxu0 0.0
        %190 = vmatprep.subr.mxu0 0.0
        %191 = vmatpush1.msra.mxu0 0.0
        %192 = vmatprep.subr.mxu0 0.0
        %193 = vmatpush1.msra.mxu0 0.0
        %194 = vmatprep.subr.mxu0 0.0
        %195 = vmatpush1.msra.mxu0 0.0
        %196 = vmatprep.subr.mxu0 0.0
        %v197 = vand.u32 %v165, 4294901760
        %198 = vmatpush1.msra.mxu0 %v197
        %199 = vmatprep.subr.mxu0 0.0
        %v200 = vand.u32 %v164, 4294901760
        %201 = vmatpush1.msra.mxu0 %v200
        %202 = vmatprep.subr.mxu0 0.0
        %v203 = vand.u32 %v163, 4294901760
        %204 = vmatpush1.msra.mxu0 %v203
        %205 = vmatprep.subr.mxu0 0.0
        %206 = vmatpush2.msra.mxu0 0.0
        %207 = vmatprep.subr.mxu0 0.0
        %208 = vmatpush2.msra.mxu0 0.0
        %209 = vmatprep.subr.mxu0 0.0
        %210 = vmatpush2.msra.mxu0 0.0
        %211 = vmatprep.subr.mxu0 0.0
        %212 = vmatpush2.msra.mxu0 0.0
        %213 = vmatprep.subr.mxu0 0.0
        %214 = vmatpush2.msra.mxu0 0.0
        %215 = vmatprep.subr.mxu0 0.0
        %216 = vmatpush2.msra.mxu0 0.0
        %217 = vmatprep.subr.mxu0 0.0
        %218 = vmatpush2.msra.mxu0 0.0
        %219 = vmatprep.subr.mxu0 0.0
        %220 = vmatpush2.msra.mxu0 0.0
        %221 = vmatprep.subr.mxu0 0.0
        %222 = vmatpush2.msra.mxu0 0.0
        %223 = vmatprep.subr.mxu0 0.0
        %224 = vmatpush2.msra.mxu0 0.0
        %225 = vmatprep.subr.mxu0 0.0
        %226 = vmatpush2.msra.mxu0 0.0
        %227 = vmatprep.subr.mxu0 0.0
        %228 = vmatpush2.msra.mxu0 0.0
        %229 = vmatprep.subr.mxu0 0.0
        %230 = vmatpush2.msra.mxu0 0.0
        %231 = vmatprep.subr.mxu0 0.0
        %232 = vmatpush2.msra.mxu0 0.0
        %233 = vmatprep.subr.mxu0 0.0
        %234 = vmatpush2.msra.mxu0 0.0
        %235 = vmatprep.subr.mxu0 0.0
        %236 = vmatpush2.msra.mxu0 0.0
        %237 = vmatprep.mubr.f32.mxu0 0.0
        %v238 = vand.u32 %v168, 4294901760
        %v239 = vsub.f32 %v168, %v238
        %v240 = vand.u32 %v239, 4294901760
        %v241 = vsub.f32 %v239, %v240
        %v242 = vand.u32 %v241, 4294901760
        %243 = vmatmul.mubr.f32.gmra.mxu0 %v242
        %v244 = vpop.f32.mrf.mxu0
        %v245 = vadd.f32 0.0, %v244
        %v246 = vpop.f32.mrf.mxu0
        %247 = vdwg.mxu0
        %248 = vmatprep.subr.mxu0 0.0
        %249 = vmatpush1.msra.mxu0 0.0
        %250 = vmatprep.subr.mxu0 0.0
        %251 = vmatpush1.msra.mxu0 0.0
        %252 = vmatprep.subr.mxu0 0.0
        %253 = vmatpush1.msra.mxu0 0.0
        %254 = vmatprep.subr.mxu0 0.0
        %255 = vmatpush1.msra.mxu0 0.0
        %256 = vmatprep.subr.mxu0 0.0
        %257 = vmatpush1.msra.mxu0 0.0
        %258 = vmatprep.subr.mxu0 0.0
        %259 = vmatpush1.msra.mxu0 0.0
        %260 = vmatprep.subr.mxu0 0.0
        %261 = vmatpush1.msra.mxu0 0.0
        %262 = vmatprep.subr.mxu0 0.0
        %263 = vmatpush1.msra.mxu0 0.0
        %264 = vmatprep.subr.mxu0 0.0
        %265 = vmatpush1.msra.mxu0 0.0
        %266 = vmatprep.subr.mxu0 0.0
        %267 = vmatpush1.msra.mxu0 0.0
        %268 = vmatprep.subr.mxu0 0.0
        %269 = vmatpush1.msra.mxu0 0.0
        %270 = vmatprep.subr.mxu0 0.0
        %271 = vmatpush1.msra.mxu0 0.0
        %272 = vmatprep.subr.mxu0 0.0
        %273 = vmatpush1.msra.mxu0 0.0
        %274 = vmatprep.subr.mxu0 0.0
        %v275 = vand.u32 %v165, 4294901760
        %v276 = vsub.f32 %v165, %v275
        %v277 = vand.u32 %v276, 4294901760
        %v278 = vsub.f32 %v276, %v277
        %v279 = vand.u32 %v278, 4294901760
        %280 = vmatpush1.msra.mxu0 %v279
        %281 = vmatprep.subr.mxu0 0.0
        %v282 = vand.u32 %v164, 4294901760
        %v283 = vsub.f32 %v164, %v282
        %v284 = vand.u32 %v283, 4294901760
        %v285 = vsub.f32 %v283, %v284
        %v286 = vand.u32 %v285, 4294901760
        %287 = vmatpush1.msra.mxu0 %v286
        %288 = vmatprep.subr.mxu0 0.0
        %v289 = vand.u32 %v163, 4294901760
        %v290 = vsub.f32 %v163, %v289
        %v291 = vand.u32 %v290, 4294901760
        %v292 = vsub.f32 %v290, %v291
        %v293 = vand.u32 %v292, 4294901760
        %294 = vmatpush1.msra.mxu0 %v293
        %295 = vmatprep.subr.mxu0 0.0
        %296 = vmatpush2.msra.mxu0 0.0
        %297 = vmatprep.subr.mxu0 0.0
        %298 = vmatpush2.msra.mxu0 0.0
        %299 = vmatprep.subr.mxu0 0.0
        %300 = vmatpush2.msra.mxu0 0.0
        %301 = vmatprep.subr.mxu0 0.0
        %302 = vmatpush2.msra.mxu0 0.0
        %303 = vmatprep.subr.mxu0 0.0
        %304 = vmatpush2.msra.mxu0 0.0
        %305 = vmatprep.subr.mxu0 0.0
        %306 = vmatpush2.msra.mxu0 0.0
        %307 = vmatprep.subr.mxu0 0.0
        %308 = vmatpush2.msra.mxu0 0.0
        %309 = vmatprep.subr.mxu0 0.0
        %310 = vmatpush2.msra.mxu0 0.0
        %311 = vmatprep.subr.mxu0 0.0
        %312 = vmatpush2.msra.mxu0 0.0
        %313 = vmatprep.subr.mxu0 0.0
        %314 = vmatpush2.msra.mxu0 0.0
        %315 = vmatprep.subr.mxu0 0.0
        %316 = vmatpush2.msra.mxu0 0.0
        %317 = vmatprep.subr.mxu0 0.0
        %318 = vmatpush2.msra.mxu0 0.0
        %319 = vmatprep.subr.mxu0 0.0
        %320 = vmatpush2.msra.mxu0 0.0
        %321 = vmatprep.subr.mxu0 0.0
        %322 = vmatpush2.msra.mxu0 0.0
        %323 = vmatprep.subr.mxu0 0.0
        %324 = vmatpush2.msra.mxu0 0.0
        %325 = vmatprep.subr.mxu0 0.0
        %326 = vmatpush2.msra.mxu0 0.0
        %327 = vmatprep.mubr.f32.mxu0 0.0
        %v328 = vand.u32 %v168, 4294901760
        %329 = vmatmul.mubr.f32.gmra.mxu0 %v328
        %v330 = vpop.f32.mrf.mxu0
        %v331 = vadd.f32 %v245, %v330
        %v332 = vpop.f32.mrf.mxu0
        %333 = vdwg.mxu0
        %334 = vmatprep.subr.mxu0 0.0
        %335 = vmatpush1.msra.mxu0 0.0
        %336 = vmatprep.subr.mxu0 0.0
        %337 = vmatpush1.msra.mxu0 0.0
        %338 = vmatprep.subr.mxu0 0.0
        %339 = vmatpush1.msra.mxu0 0.0
        %340 = vmatprep.subr.mxu0 0.0
        %341 = vmatpush1.msra.mxu0 0.0
        %342 = vmatprep.subr.mxu0 0.0
        %343 = vmatpush1.msra.mxu0 0.0
        %344 = vmatprep.subr.mxu0 0.0
        %345 = vmatpush1.msra.mxu0 0.0
        %346 = vmatprep.subr.mxu0 0.0
        %347 = vmatpush1.msra.mxu0 0.0
        %348 = vmatprep.subr.mxu0 0.0
        %349 = vmatpush1.msra.mxu0 0.0
        %350 = vmatprep.subr.mxu0 0.0
        %351 = vmatpush1.msra.mxu0 0.0
        %352 = vmatprep.subr.mxu0 0.0
        %353 = vmatpush1.msra.mxu0 0.0
        %354 = vmatprep.subr.mxu0 0.0
        %355 = vmatpush1.msra.mxu0 0.0
        %356 = vmatprep.subr.mxu0 0.0
        %357 = vmatpush1.msra.mxu0 0.0
        %358 = vmatprep.subr.mxu0 0.0
        %359 = vmatpush1.msra.mxu0 0.0
        %360 = vmatprep.subr.mxu0 0.0
        %v361 = vand.u32 %v165, 4294901760
        %v362 = vsub.f32 %v165, %v361
        %363 = vmatpush1.msra.mxu0 %v362
        %364 = vmatprep.subr.mxu0 0.0
        %v365 = vand.u32 %v164, 4294901760
        %v366 = vsub.f32 %v164, %v365
        %367 = vmatpush1.msra.mxu0 %v366
        %368 = vmatprep.subr.mxu0 0.0
        %v369 = vand.u32 %v163, 4294901760
        %v370 = vsub.f32 %v163, %v369
        %371 = vmatpush1.msra.mxu0 %v370
        %372 = vmatprep.subr.mxu0 0.0
        %373 = vmatpush2.msra.mxu0 0.0
        %374 = vmatprep.subr.mxu0 0.0
        %375 = vmatpush2.msra.mxu0 0.0
        %376 = vmatprep.subr.mxu0 0.0
        %377 = vmatpush2.msra.mxu0 0.0
        %378 = vmatprep.subr.mxu0 0.0
        %379 = vmatpush2.msra.mxu0 0.0
        %380 = vmatprep.subr.mxu0 0.0
        %381 = vmatpush2.msra.mxu0 0.0
        %382 = vmatprep.subr.mxu0 0.0
        %383 = vmatpush2.msra.mxu0 0.0
        %384 = vmatprep.subr.mxu0 0.0
        %385 = vmatpush2.msra.mxu0 0.0
        %386 = vmatprep.subr.mxu0 0.0
        %387 = vmatpush2.msra.mxu0 0.0
        %388 = vmatprep.subr.mxu0 0.0
        %389 = vmatpush2.msra.mxu0 0.0
        %390 = vmatprep.subr.mxu0 0.0
        %391 = vmatpush2.msra.mxu0 0.0
        %392 = vmatprep.subr.mxu0 0.0
        %393 = vmatpush2.msra.mxu0 0.0
        %394 = vmatprep.subr.mxu0 0.0
        %395 = vmatpush2.msra.mxu0 0.0
        %396 = vmatprep.subr.mxu0 0.0
        %397 = vmatpush2.msra.mxu0 0.0
        %398 = vmatprep.subr.mxu0 0.0
        %399 = vmatpush2.msra.mxu0 0.0
        %400 = vmatprep.subr.mxu0 0.0
        %401 = vmatpush2.msra.mxu0 0.0
        %402 = vmatprep.subr.mxu0 0.0
        %403 = vmatpush2.msra.mxu0 0.0
        %404 = vmatprep.mubr.f32.mxu0 0.0
        %v405 = vand.u32 %v168, 4294901760
        %v406 = vsub.f32 %v168, %v405
        %407 = vmatmul.mubr.f32.gmra.mxu0 %v406
        %v408 = vpop.f32.mrf.mxu0
        %v409 = vadd.f32 %v331, %v408
        %v410 = vpop.f32.mrf.mxu0
        %411 = vdwg.mxu0
        %412 = vmatprep.subr.mxu0 0.0
        %413 = vmatpush1.msra.mxu0 0.0
        %414 = vmatprep.subr.mxu0 0.0
        %415 = vmatpush1.msra.mxu0 0.0
        %416 = vmatprep.subr.mxu0 0.0
        %417 = vmatpush1.msra.mxu0 0.0
        %418 = vmatprep.subr.mxu0 0.0
        %419 = vmatpush1.msra.mxu0 0.0
        %420 = vmatprep.subr.mxu0 0.0
        %421 = vmatpush1.msra.mxu0 0.0
        %422 = vmatprep.subr.mxu0 0.0
        %423 = vmatpush1.msra.mxu0 0.0
        %424 = vmatprep.subr.mxu0 0.0
        %425 = vmatpush1.msra.mxu0 0.0
        %426 = vmatprep.subr.mxu0 0.0
        %427 = vmatpush1.msra.mxu0 0.0
        %428 = vmatprep.subr.mxu0 0.0
        %429 = vmatpush1.msra.mxu0 0.0
        %430 = vmatprep.subr.mxu0 0.0
        %431 = vmatpush1.msra.mxu0 0.0
        %432 = vmatprep.subr.mxu0 0.0
        %433 = vmatpush1.msra.mxu0 0.0
        %434 = vmatprep.subr.mxu0 0.0
        %435 = vmatpush1.msra.mxu0 0.0
        %436 = vmatprep.subr.mxu0 0.0
        %437 = vmatpush1.msra.mxu0 0.0
        %438 = vmatprep.subr.mxu0 0.0
        %v439 = vand.u32 %v165, 4294901760
        %440 = vmatpush1.msra.mxu0 %v439
        %441 = vmatprep.subr.mxu0 0.0
        %v442 = vand.u32 %v164, 4294901760
        %443 = vmatpush1.msra.mxu0 %v442
        %444 = vmatprep.subr.mxu0 0.0
        %v445 = vand.u32 %v163, 4294901760
        %446 = vmatpush1.msra.mxu0 %v445
        %447 = vmatprep.subr.mxu0 0.0
        %448 = vmatpush2.msra.mxu0 0.0
        %449 = vmatprep.subr.mxu0 0.0
        %450 = vmatpush2.msra.mxu0 0.0
        %451 = vmatprep.subr.mxu0 0.0
        %452 = vmatpush2.msra.mxu0 0.0
        %453 = vmatprep.subr.mxu0 0.0
        %454 = vmatpush2.msra.mxu0 0.0
        %455 = vmatprep.subr.mxu0 0.0
        %456 = vmatpush2.msra.mxu0 0.0
        %457 = vmatprep.subr.mxu0 0.0
        %458 = vmatpush2.msra.mxu0 0.0
        %459 = vmatprep.subr.mxu0 0.0
        %460 = vmatpush2.msra.mxu0 0.0
        %461 = vmatprep.subr.mxu0 0.0
        %462 = vmatpush2.msra.mxu0 0.0
        %463 = vmatprep.subr.mxu0 0.0
        %464 = vmatpush2.msra.mxu0 0.0
        %465 = vmatprep.subr.mxu0 0.0
        %466 = vmatpush2.msra.mxu0 0.0
        %467 = vmatprep.subr.mxu0 0.0
        %468 = vmatpush2.msra.mxu0 0.0
        %469 = vmatprep.subr.mxu0 0.0
        %470 = vmatpush2.msra.mxu0 0.0
        %471 = vmatprep.subr.mxu0 0.0
        %472 = vmatpush2.msra.mxu0 0.0
        %473 = vmatprep.subr.mxu0 0.0
        %474 = vmatpush2.msra.mxu0 0.0
        %475 = vmatprep.subr.mxu0 0.0
        %476 = vmatpush2.msra.mxu0 0.0
        %477 = vmatprep.subr.mxu0 0.0
        %478 = vmatpush2.msra.mxu0 0.0
        %479 = vmatprep.mubr.f32.mxu0 0.0
        %v480 = vand.u32 %v168, 4294901760
        %v481 = vsub.f32 %v168, %v480
        %v482 = vand.u32 %v481, 4294901760
        %483 = vmatmul.mubr.f32.gmra.mxu0 %v482
        %v484 = vpop.f32.mrf.mxu0
        %v485 = vadd.f32 %v409, %v484
        %v486 = vpop.f32.mrf.mxu0
        %487 = vdwg.mxu0
        %488 = vmatprep.subr.mxu0 0.0
        %489 = vmatpush1.msra.mxu0 0.0
        %490 = vmatprep.subr.mxu0 0.0
        %491 = vmatpush1.msra.mxu0 0.0
        %492 = vmatprep.subr.mxu0 0.0
        %493 = vmatpush1.msra.mxu0 0.0
        %494 = vmatprep.subr.mxu0 0.0
        %495 = vmatpush1.msra.mxu0 0.0
        %496 = vmatprep.subr.mxu0 0.0
        %497 = vmatpush1.msra.mxu0 0.0
        %498 = vmatprep.subr.mxu0 0.0
        %499 = vmatpush1.msra.mxu0 0.0
        %500 = vmatprep.subr.mxu0 0.0
        %501 = vmatpush1.msra.mxu0 0.0
        %502 = vmatprep.subr.mxu0 0.0
        %503 = vmatpush1.msra.mxu0 0.0
        %504 = vmatprep.subr.mxu0 0.0
        %505 = vmatpush1.msra.mxu0 0.0
        %506 = vmatprep.subr.mxu0 0.0
        %507 = vmatpush1.msra.mxu0 0.0
        %508 = vmatprep.subr.mxu0 0.0
        %509 = vmatpush1.msra.mxu0 0.0
        %510 = vmatprep.subr.mxu0 0.0
        %511 = vmatpush1.msra.mxu0 0.0
        %512 = vmatprep.subr.mxu0 0.0
        %513 = vmatpush1.msra.mxu0 0.0
        %514 = vmatprep.subr.mxu0 0.0
        %v515 = vand.u32 %v165, 4294901760
        %v516 = vsub.f32 %v165, %v515
        %v517 = vand.u32 %v516, 4294901760
        %518 = vmatpush1.msra.mxu0 %v517
        %519 = vmatprep.subr.mxu0 0.0
        %v520 = vand.u32 %v164, 4294901760
        %v521 = vsub.f32 %v164, %v520
        %v522 = vand.u32 %v521, 4294901760
        %523 = vmatpush1.msra.mxu0 %v522
        %524 = vmatprep.subr.mxu0 0.0
        %v525 = vand.u32 %v163, 4294901760
        %v526 = vsub.f32 %v163, %v525
        %v527 = vand.u32 %v526, 4294901760
        %528 = vmatpush1.msra.mxu0 %v527
        %529 = vmatprep.subr.mxu0 0.0
        %530 = vmatpush2.msra.mxu0 0.0
        %531 = vmatprep.subr.mxu0 0.0
        %532 = vmatpush2.msra.mxu0 0.0
        %533 = vmatprep.subr.mxu0 0.0
        %534 = vmatpush2.msra.mxu0 0.0
        %535 = vmatprep.subr.mxu0 0.0
        %536 = vmatpush2.msra.mxu0 0.0
        %537 = vmatprep.subr.mxu0 0.0
        %538 = vmatpush2.msra.mxu0 0.0
        %539 = vmatprep.subr.mxu0 0.0
        %540 = vmatpush2.msra.mxu0 0.0
        %541 = vmatprep.subr.mxu0 0.0
        %542 = vmatpush2.msra.mxu0 0.0
        %543 = vmatprep.subr.mxu0 0.0
        %544 = vmatpush2.msra.mxu0 0.0
        %545 = vmatprep.subr.mxu0 0.0
        %546 = vmatpush2.msra.mxu0 0.0
        %547 = vmatprep.subr.mxu0 0.0
        %548 = vmatpush2.msra.mxu0 0.0
        %549 = vmatprep.subr.mxu0 0.0
        %550 = vmatpush2.msra.mxu0 0.0
        %551 = vmatprep.subr.mxu0 0.0
        %552 = vmatpush2.msra.mxu0 0.0
        %553 = vmatprep.subr.mxu0 0.0
        %554 = vmatpush2.msra.mxu0 0.0
        %555 = vmatprep.subr.mxu0 0.0
        %556 = vmatpush2.msra.mxu0 0.0
        %557 = vmatprep.subr.mxu0 0.0
        %558 = vmatpush2.msra.mxu0 0.0
        %559 = vmatprep.subr.mxu0 0.0
        %560 = vmatpush2.msra.mxu0 0.0
        %561 = vmatprep.mubr.f32.mxu0 0.0
        %v562 = vand.u32 %v168, 4294901760
        %563 = vmatmul.mubr.f32.gmra.mxu0 %v562
        %v564 = vpop.f32.mrf.mxu0
        %v565 = vadd.f32 %v485, %v564
        %v566 = vpop.f32.mrf.mxu0
        %567 = vdwg.mxu0
        %568 = vmatprep.subr.mxu0 0.0
        %569 = vmatpush1.msra.mxu0 0.0
        %570 = vmatprep.subr.mxu0 0.0
        %571 = vmatpush1.msra.mxu0 0.0
        %572 = vmatprep.subr.mxu0 0.0
        %573 = vmatpush1.msra.mxu0 0.0
        %574 = vmatprep.subr.mxu0 0.0
        %575 = vmatpush1.msra.mxu0 0.0
        %576 = vmatprep.subr.mxu0 0.0
        %577 = vmatpush1.msra.mxu0 0.0
        %578 = vmatprep.subr.mxu0 0.0
        %579 = vmatpush1.msra.mxu0 0.0
        %580 = vmatprep.subr.mxu0 0.0
        %581 = vmatpush1.msra.mxu0 0.0
        %582 = vmatprep.subr.mxu0 0.0
        %583 = vmatpush1.msra.mxu0 0.0
        %584 = vmatprep.subr.mxu0 0.0
        %585 = vmatpush1.msra.mxu0 0.0
        %586 = vmatprep.subr.mxu0 0.0
        %587 = vmatpush1.msra.mxu0 0.0
        %588 = vmatprep.subr.mxu0 0.0
        %589 = vmatpush1.msra.mxu0 0.0
        %590 = vmatprep.subr.mxu0 0.0
        %591 = vmatpush1.msra.mxu0 0.0
        %592 = vmatprep.subr.mxu0 0.0
        %593 = vmatpush1.msra.mxu0 0.0
        %594 = vmatprep.subr.mxu0 0.0
        %v595 = vand.u32 %v165, 4294901760
        %596 = vmatpush1.msra.mxu0 %v595
        %597 = vmatprep.subr.mxu0 0.0
        %v598 = vand.u32 %v164, 4294901760
        %599 = vmatpush1.msra.mxu0 %v598
        %600 = vmatprep.subr.mxu0 0.0
        %v601 = vand.u32 %v163, 4294901760
        %602 = vmatpush1.msra.mxu0 %v601
        %603 = vmatprep.subr.mxu0 0.0
        %604 = vmatpush2.msra.mxu0 0.0
        %605 = vmatprep.subr.mxu0 0.0
        %606 = vmatpush2.msra.mxu0 0.0
        %607 = vmatprep.subr.mxu0 0.0
        %608 = vmatpush2.msra.mxu0 0.0
        %609 = vmatprep.subr.mxu0 0.0
        %610 = vmatpush2.msra.mxu0 0.0
        %611 = vmatprep.subr.mxu0 0.0
        %612 = vmatpush2.msra.mxu0 0.0
        %613 = vmatprep.subr.mxu0 0.0
        %614 = vmatpush2.msra.mxu0 0.0
        %615 = vmatprep.subr.mxu0 0.0
        %616 = vmatpush2.msra.mxu0 0.0
        %617 = vmatprep.subr.mxu0 0.0
        %618 = vmatpush2.msra.mxu0 0.0
        %619 = vmatprep.subr.mxu0 0.0
        %620 = vmatpush2.msra.mxu0 0.0
        %621 = vmatprep.subr.mxu0 0.0
        %622 = vmatpush2.msra.mxu0 0.0
        %623 = vmatprep.subr.mxu0 0.0
        %624 = vmatpush2.msra.mxu0 0.0
        %625 = vmatprep.subr.mxu0 0.0
        %626 = vmatpush2.msra.mxu0 0.0
        %627 = vmatprep.subr.mxu0 0.0
        %628 = vmatpush2.msra.mxu0 0.0
        %629 = vmatprep.subr.mxu0 0.0
        %630 = vmatpush2.msra.mxu0 0.0
        %631 = vmatprep.subr.mxu0 0.0
        %632 = vmatpush2.msra.mxu0 0.0
        %633 = vmatprep.subr.mxu0 0.0
        %634 = vmatpush2.msra.mxu0 0.0
        %635 = vmatprep.mubr.f32.mxu0 0.0
        %v636 = vand.u32 %v168, 4294901760
        %637 = vmatmul.mubr.f32.gmra.mxu0 %v636
        %v638 = vpop.f32.mrf.mxu0
        %v639 = vadd.f32 %v565, %v638
        %v640 = vpop.f32.mrf.mxu0
        %641 = vdwg.mxu0
        %642 = vst [vmem:[%s149] sm:$0xff] %v639
        %s643 = sand.u32 %s72, 1
        %s644 = scalar_lea.sflag [#allocation4], %s643
        %s645 = sand.u32 %s72, 1
        %s646 = smul.addr %s645, 8
        %s647 = scalar_lea.vmem [#allocation5], %s646
        // Predicated region
        $region33: #{tpu_custom_call.1} parent=27 // pred_check
          %p648 = pneg %p82
        $region34: #{tpu_custom_call.1} parent=27 // pred_check_branch
          %650 = sbr.rel (%p648) target = $region36
        $region35: #{tpu_custom_call.1} parent=27 // pred_region
          %s652 = ssub.s32 128, 128
          %653 = vsyncadd %s644, %s652
          %s654 = smul.addr %s17, 128
          %s655 = scalar_lea.hbm %s2, %s654
          %s657 = sshll.u32 %s647, 4
          %s658 = int_to_ptr.vmem [resolvable:$true] %s657
          %660 = dma.vmem_to_hbm [thread:$0]  %s658, 128, %s655, %s644
        $region36: #{tpu_custom_call.1} parent=27 // pred_fallthru
          _
      $region28: #{tpu_custom_call.1} parent=5 // pred_fallthru
        _
      %p661 = scmp.le.s32.totalorder 2, %s12
      // Predicated region
      $region37: #{tpu_custom_call.1} parent=5 // pred_check
        %p662 = pneg %p661
      $region38: #{tpu_custom_call.1} parent=5 // pred_check_branch
        %664 = sbr.rel (%p662) target = $region40
      $region39: #{tpu_custom_call.1} parent=5 // pred_region
        %s665 = ssub.s32 %s12, 2
        // Predicated region
        $region41: #{tpu_custom_call.1} parent=39 // pred_check
          %p666 = pneg %p88
        $region42: #{tpu_custom_call.1} parent=39 // pred_check_branch
          %668 = sbr.rel (%p666) target = $region44
        $region43: #{tpu_custom_call.1} parent=39 // pred_region
          %s669 = sand.u32 %s73, 1
          %s670 = scalar_lea.sflag [#allocation4], %s669
          %s671 = sand.u32 %s73, 1
          %s672 = smul.addr %s671, 8
          %s673 = scalar_lea.vmem [#allocation5], %s672
          %674 = dma.done %s670, 128
        $region44: #{tpu_custom_call.1} parent=39 // pred_fallthru
          _
      $region40: #{tpu_custom_call.1} parent=5 // pred_fallthru
        _
    $region6: #{tpu_custom_call.1} parent=1 // loop_footer
      %s16 = sadd.s32 1, %s12
    $region7: #{tpu_custom_call.1} parent=1 // loop_footer_branch
      %11 = sbr.rel target = $region3
    $region8: #{tpu_custom_call.1} parent=1 // loop_exit
      _
    %675 = vsyncpa [#allocation3], 1
    %s676 = scalar_lea.sflag [#allocation3], 1
    %677 = vsyncpa %s676, 1
    %678 = vsyncpa [#allocation4], 1
    %s679 = scalar_lea.sflag [#allocation4], 1
    %680 = vsyncpa %s679, 1

</llo_original>
